<compile_context>
chip_gen: v7x
topology: tpu7x:2x2x1
jax: 0.10.0
libtpu: 0.0.40
codegen_flags: <defaults>
</compile_context>

<pallas_src>
import jax
import jax.numpy as jnp
from jax.experimental import pallas as pl
from jax.experimental.pallas import tpu as pltpu


LANE = 128


def _round_up(a: int, b: int) -> int:
    return ((a + b - 1) // b) * b


def _supports_bf16_eup() -> bool:
    """bf16 VPU/EUP exists on v6e / v7x; keep f32 compute on older chips."""
    try:
        kind = jax.devices()[0].device_kind.lower()
    except Exception:
        return False
    return ("v6" in kind) or ("v7" in kind) or ("7x" in kind)


def _make_dist_fun_kernel(H: int, use_bf16_tanh: bool):
    def kernel(params_ref, x_ref, o_ref):
        # params_ref : SMEM (3*H + 1,) = [0.5*w1 | 0.5*b1 | 0.5*w2 | b2 + 0.5*sum(w2)]
        # x_ref      : VMEM (TM, 128) lane-dense input block
        # o_ref      : VMEM (TM, 128) lane-dense output block
        x = x_ref[...]                                           # (TM, 128) f32
        acc = jnp.full(x.shape, params_ref[3 * H], dtype=jnp.float32)

        # Fully unrolled hidden-unit loop (H is static): one EUP tanh per unit,
        # everything else is full-width VPU work with static SMEM scalar operands.
        for j in range(H):
            w1j = params_ref[j]            # 0.5 * w1[j]
            b1j = params_ref[H + j]        # 0.5 * b1[j]
            w2j = params_ref[2 * H + j]    # 0.5 * w2[j]
            h = x * w1j + b1j
            if use_bf16_tanh:
                t = jnp.tanh(h.astype(jnp.bfloat16)).astype(jnp.float32)
            else:
                t = jnp.tanh(h)
            acc = acc + w2j * t

        o_ref[...] = acc.astype(o_ref.dtype)

    return kernel


def dist_fun_forward(x, w1, b1, w2, b2, *, row_tile=2048, use_bf16_tanh=None):
    """Forward pass of dist_fun.

    x  : (N, 1) f32
    w1 : (H, 1), b1 : (H,)   -- first Linear (PyTorch layout)
    w2 : (1, H), b2 : (1,)   -- second Linear (PyTorch layout)
    returns (N, 1) f32
    """
    N = x.shape[0]
    H = w1.shape[0]
    if use_bf16_tanh is None:
        use_bf16_tanh = _supports_bf16_eup()

    # Fold the sigmoid identity sigmoid(h) = 0.5*(tanh(0.5*h) + 1) into the params.
    w1f = (0.5 * w1.reshape(H)).astype(jnp.float32)
    b1f = (0.5 * b1.reshape(H)).astype(jnp.float32)
    w2f = (0.5 * w2.reshape(H)).astype(jnp.float32)
    c0 = b2.reshape(1).astype(jnp.float32) + jnp.sum(w2f).reshape(1)
    params = jnp.concatenate([w1f, b1f, w2f, c0])                  # (3*H + 1,)

    # Lane-dense layout: flatten the N scalar inputs onto (rows, 128).
    rows = max(1, (N + LANE - 1) // LANE)
    # Big tiles amortize per-step overhead; cap at ceil(rows/2) so the grid has
    # >= 2 parallel steps whenever possible (feeds both v7x TensorCores).
    half = _round_up((rows + 1) // 2, 8)
    tm = min(row_tile, max(8, half))
    padded_rows = _round_up(rows, tm)
    total = padded_rows * LANE

    x_flat = jnp.ravel(x).astype(jnp.float32)
    x_pad = jnp.pad(x_flat, (0, total - N))
    x2d = x_pad.reshape(padded_rows, LANE)

    grid = (padded_rows // tm,)

    out2d = pl.pallas_call(
        _make_dist_fun_kernel(H, use_bf16_tanh),
        out_shape=jax.ShapeDtypeStruct((padded_rows, LANE), jnp.float32),
        grid_spec=pltpu.PrefetchScalarGridSpec(
            num_scalar_prefetch=0,
            grid=grid,
            in_specs=[
                # 1-D parameter table in SMEM (static scalar reads in the kernel).
                pl.BlockSpec(memory_space=pltpu.MemorySpace.SMEM),
                # Lane-dense input tile.
                pl.BlockSpec((tm, LANE), lambda i: (i, 0)),
            ],
            # Lane-dense output tile (full-width, unmasked stores).
            out_specs=pl.BlockSpec((tm, LANE), lambda i: (i, 0)),
        ),
        compiler_params=pltpu.CompilerParams(
            # Row-tile axis is independent -> shards across the 2 TCs on v7x.
            dimension_semantics=("parallel",),
        ),
    )(params, x2d)

    return out2d.reshape(total, 1)[:N]


def reference_forward(x, w1, b1, w2, b2):
    h = jax.nn.sigmoid(x @ w1.T + b1)     # (N, H)
    return h @ w2.T + b2                  # (N, 1)


if __name__ == "__main__":
    hidden_dim = 32   # small, consistent with the module's hidden_dim param

    key = jax.random.PRNGKey(0)
    kx, k1, k2, k3, k4 = jax.random.split(key, 5)

    # Deterministic parameter init (PyTorch Linear-style uniform bounds, PyTorch shapes).
    bound1 = 1.0                                      # fan_in = 1
    w1 = jax.random.uniform(k1, (hidden_dim, 1), jnp.float32, -bound1, bound1)
    b1 = jax.random.uniform(k2, (hidden_dim,), jnp.float32, -bound1, bound1)
    bound2 = 1.0 / float(hidden_dim ** 0.5)           # fan_in = hidden_dim
    w2 = jax.random.uniform(k3, (1, hidden_dim), jnp.float32, -bound2, bound2)
    b2 = jax.random.uniform(k4, (1,), jnp.float32, -bound2, bound2)

    use_bf16 = _supports_bf16_eup()
    tol = 5e-2 if use_bf16 else 1e-5

    # Exercise both the single-step and multi-step ("parallel") grid paths.
    for N in (16, 2048):
        x = jax.random.normal(kx, (N, 1), jnp.float32)
        out = jax.block_until_ready(dist_fun_forward(x, w1, b1, w2, b2))
        ref = reference_forward(x, w1, b1, w2, b2)
        assert out.shape == (N, 1)
        assert jnp.allclose(out, ref, atol=tol, rtol=tol), (N, out, ref)

    # TODO(synk): `derivative` (autograd.grad w.r.t. input) is not part of forward();
    # it is expressible via jax.grad on `dist_fun_forward` rather than inside the kernel.
    print("KERNEL_OK")
</pallas_src>

<mosaic_0001>
module attributes {stable_mosaic.version = 11 : i64} {
  func.func @kernel(%arg0: i32, %arg1: memref<97xf32, #tpu.memory_space<smem>>, %arg2: memref<8x128xf32, #tpu.memory_space<vmem>>, %arg3: memref<8x128xf32, #tpu.memory_space<vmem>>) attributes {dimension_semantics = [#tpu.dimension_semantics<parallel>], iteration_bounds = array<i64: 1>, scalar_prefetch = 0 : i64, scratch_operands = 0 : i64, tpu.core_type = #tpu.core_type<tc>, window_params = [{transform_indices = @transform_0, window_bounds = array<i64: 97>}, {transform_indices = @transform_1, window_bounds = array<i64: 8, 128>}, {transform_indices = @transform_2, window_bounds = array<i64: 8, 128>}]} {
    %c0 = arith.constant 0 : index
    %c0_0 = arith.constant 0 : index
    %0 = vector.load %arg2[%c0, %c0_0] : memref<8x128xf32, #tpu.memory_space<vmem>>, vector<8x128xf32>
    %c96 = arith.constant 96 : index
    %1 = memref.load %arg1[%c96] : memref<97xf32, #tpu.memory_space<smem>>
    %2 = vector.broadcast %1 : f32 to vector<8x128xf32>
    %c0_1 = arith.constant 0 : index
    %3 = memref.load %arg1[%c0_1] : memref<97xf32, #tpu.memory_space<smem>>
    %c32 = arith.constant 32 : index
    %4 = memref.load %arg1[%c32] : memref<97xf32, #tpu.memory_space<smem>>
    %c64 = arith.constant 64 : index
    %5 = memref.load %arg1[%c64] : memref<97xf32, #tpu.memory_space<smem>>
    %6 = vector.broadcast %3 : f32 to vector<8x128xf32>
    %7 = arith.mulf %0, %6 : vector<8x128xf32>
    %8 = vector.broadcast %4 : f32 to vector<8x128xf32>
    %9 = arith.addf %7, %8 : vector<8x128xf32>
    %10 = math.tanh %9 : vector<8x128xf32>
    %11 = vector.broadcast %5 : f32 to vector<8x128xf32>
    %12 = arith.mulf %11, %10 : vector<8x128xf32>
    %13 = arith.addf %2, %12 : vector<8x128xf32>
    %c1 = arith.constant 1 : index
    %14 = memref.load %arg1[%c1] : memref<97xf32, #tpu.memory_space<smem>>
    %c33 = arith.constant 33 : index
    %15 = memref.load %arg1[%c33] : memref<97xf32, #tpu.memory_space<smem>>
    %c65 = arith.constant 65 : index
    %16 = memref.load %arg1[%c65] : memref<97xf32, #tpu.memory_space<smem>>
    %17 = vector.broadcast %14 : f32 to vector<8x128xf32>
    %18 = arith.mulf %0, %17 : vector<8x128xf32>
    %19 = vector.broadcast %15 : f32 to vector<8x128xf32>
    %20 = arith.addf %18, %19 : vector<8x128xf32>
    %21 = math.tanh %20 : vector<8x128xf32>
    %22 = vector.broadcast %16 : f32 to vector<8x128xf32>
    %23 = arith.mulf %22, %21 : vector<8x128xf32>
    %24 = arith.addf %13, %23 : vector<8x128xf32>
    %c2 = arith.constant 2 : index
    %25 = memref.load %arg1[%c2] : memref<97xf32, #tpu.memory_space<smem>>
    %c34 = arith.constant 34 : index
    %26 = memref.load %arg1[%c34] : memref<97xf32, #tpu.memory_space<smem>>
    %c66 = arith.constant 66 : index
    %27 = memref.load %arg1[%c66] : memref<97xf32, #tpu.memory_space<smem>>
    %28 = vector.broadcast %25 : f32 to vector<8x128xf32>
    %29 = arith.mulf %0, %28 : vector<8x128xf32>
    %30 = vector.broadcast %26 : f32 to vector<8x128xf32>
    %31 = arith.addf %29, %30 : vector<8x128xf32>
    %32 = math.tanh %31 : vector<8x128xf32>
    %33 = vector.broadcast %27 : f32 to vector<8x128xf32>
    %34 = arith.mulf %33, %32 : vector<8x128xf32>
    %35 = arith.addf %24, %34 : vector<8x128xf32>
    %c3 = arith.constant 3 : index
    %36 = memref.load %arg1[%c3] : memref<97xf32, #tpu.memory_space<smem>>
    %c35 = arith.constant 35 : index
    %37 = memref.load %arg1[%c35] : memref<97xf32, #tpu.memory_space<smem>>
    %c67 = arith.constant 67 : index
    %38 = memref.load %arg1[%c67] : memref<97xf32, #tpu.memory_space<smem>>
    %39 = vector.broadcast %36 : f32 to vector<8x128xf32>
    %40 = arith.mulf %0, %39 : vector<8x128xf32>
    %41 = vector.broadcast %37 : f32 to vector<8x128xf32>
    %42 = arith.addf %40, %41 : vector<8x128xf32>
    %43 = math.tanh %42 : vector<8x128xf32>
    %44 = vector.broadcast %38 : f32 to vector<8x128xf32>
    %45 = arith.mulf %44, %43 : vector<8x128xf32>
    %46 = arith.addf %35, %45 : vector<8x128xf32>
    %c4 = arith.constant 4 : index
    %47 = memref.load %arg1[%c4] : memref<97xf32, #tpu.memory_space<smem>>
    %c36 = arith.constant 36 : index
    %48 = memref.load %arg1[%c36] : memref<97xf32, #tpu.memory_space<smem>>
    %c68 = arith.constant 68 : index
    %49 = memref.load %arg1[%c68] : memref<97xf32, #tpu.memory_space<smem>>
    %50 = vector.broadcast %47 : f32 to vector<8x128xf32>
    %51 = arith.mulf %0, %50 : vector<8x128xf32>
    %52 = vector.broadcast %48 : f32 to vector<8x128xf32>
    %53 = arith.addf %51, %52 : vector<8x128xf32>
    %54 = math.tanh %53 : vector<8x128xf32>
    %55 = vector.broadcast %49 : f32 to vector<8x128xf32>
    %56 = arith.mulf %55, %54 : vector<8x128xf32>
    %57 = arith.addf %46, %56 : vector<8x128xf32>
    %c5 = arith.constant 5 : index
    %58 = memref.load %arg1[%c5] : memref<97xf32, #tpu.memory_space<smem>>
    %c37 = arith.constant 37 : index
    %59 = memref.load %arg1[%c37] : memref<97xf32, #tpu.memory_space<smem>>
    %c69 = arith.constant 69 : index
    %60 = memref.load %arg1[%c69] : memref<97xf32, #tpu.memory_space<smem>>
    %61 = vector.broadcast %58 : f32 to vector<8x128xf32>
    %62 = arith.mulf %0, %61 : vector<8x128xf32>
    %63 = vector.broadcast %59 : f32 to vector<8x128xf32>
    %64 = arith.addf %62, %63 : vector<8x128xf32>
    %65 = math.tanh %64 : vector<8x128xf32>
    %66 = vector.broadcast %60 : f32 to vector<8x128xf32>
    %67 = arith.mulf %66, %65 : vector<8x128xf32>
    %68 = arith.addf %57, %67 : vector<8x128xf32>
    %c6 = arith.constant 6 : index
    %69 = memref.load %arg1[%c6] : memref<97xf32, #tpu.memory_space<smem>>
    %c38 = arith.constant 38 : index
    %70 = memref.load %arg1[%c38] : memref<97xf32, #tpu.memory_space<smem>>
    %c70 = arith.constant 70 : index
    %71 = memref.load %arg1[%c70] : memref<97xf32, #tpu.memory_space<smem>>
    %72 = vector.broadcast %69 : f32 to vector<8x128xf32>
    %73 = arith.mulf %0, %72 : vector<8x128xf32>
    %74 = vector.broadcast %70 : f32 to vector<8x128xf32>
    %75 = arith.addf %73, %74 : vector<8x128xf32>
    %76 = math.tanh %75 : vector<8x128xf32>
    %77 = vector.broadcast %71 : f32 to vector<8x128xf32>
    %78 = arith.mulf %77, %76 : vector<8x128xf32>
    %79 = arith.addf %68, %78 : vector<8x128xf32>
    %c7 = arith.constant 7 : index
    %80 = memref.load %arg1[%c7] : memref<97xf32, #tpu.memory_space<smem>>
    %c39 = arith.constant 39 : index
    %81 = memref.load %arg1[%c39] : memref<97xf32, #tpu.memory_space<smem>>
    %c71 = arith.constant 71 : index
    %82 = memref.load %arg1[%c71] : memref<97xf32, #tpu.memory_space<smem>>
    %83 = vector.broadcast %80 : f32 to vector<8x128xf32>
    %84 = arith.mulf %0, %83 : vector<8x128xf32>
    %85 = vector.broadcast %81 : f32 to vector<8x128xf32>
    %86 = arith.addf %84, %85 : vector<8x128xf32>
    %87 = math.tanh %86 : vector<8x128xf32>
    %88 = vector.broadcast %82 : f32 to vector<8x128xf32>
    %89 = arith.mulf %88, %87 : vector<8x128xf32>
    %90 = arith.addf %79, %89 : vector<8x128xf32>
    %c8 = arith.constant 8 : index
    %91 = memref.load %arg1[%c8] : memref<97xf32, #tpu.memory_space<smem>>
    %c40 = arith.constant 40 : index
    %92 = memref.load %arg1[%c40] : memref<97xf32, #tpu.memory_space<smem>>
    %c72 = arith.constant 72 : index
    %93 = memref.load %arg1[%c72] : memref<97xf32, #tpu.memory_space<smem>>
    %94 = vector.broadcast %91 : f32 to vector<8x128xf32>
    %95 = arith.mulf %0, %94 : vector<8x128xf32>
    %96 = vector.broadcast %92 : f32 to vector<8x128xf32>
    %97 = arith.addf %95, %96 : vector<8x128xf32>
    %98 = math.tanh %97 : vector<8x128xf32>
    %99 = vector.broadcast %93 : f32 to vector<8x128xf32>
    %100 = arith.mulf %99, %98 : vector<8x128xf32>
    %101 = arith.addf %90, %100 : vector<8x128xf32>
    %c9 = arith.constant 9 : index
    %102 = memref.load %arg1[%c9] : memref<97xf32, #tpu.memory_space<smem>>
    %c41 = arith.constant 41 : index
    %103 = memref.load %arg1[%c41] : memref<97xf32, #tpu.memory_space<smem>>
    %c73 = arith.constant 73 : index
    %104 = memref.load %arg1[%c73] : memref<97xf32, #tpu.memory_space<smem>>
    %105 = vector.broadcast %102 : f32 to vector<8x128xf32>
    %106 = arith.mulf %0, %105 : vector<8x128xf32>
    %107 = vector.broadcast %103 : f32 to vector<8x128xf32>
    %108 = arith.addf %106, %107 : vector<8x128xf32>
    %109 = math.tanh %108 : vector<8x128xf32>
    %110 = vector.broadcast %104 : f32 to vector<8x128xf32>
    %111 = arith.mulf %110, %109 : vector<8x128xf32>
    %112 = arith.addf %101, %111 : vector<8x128xf32>
    %c10 = arith.constant 10 : index
    %113 = memref.load %arg1[%c10] : memref<97xf32, #tpu.memory_space<smem>>
    %c42 = arith.constant 42 : index
    %114 = memref.load %arg1[%c42] : memref<97xf32, #tpu.memory_space<smem>>
    %c74 = arith.constant 74 : index
    %115 = memref.load %arg1[%c74] : memref<97xf32, #tpu.memory_space<smem>>
    %116 = vector.broadcast %113 : f32 to vector<8x128xf32>
    %117 = arith.mulf %0, %116 : vector<8x128xf32>
    %118 = vector.broadcast %114 : f32 to vector<8x128xf32>
    %119 = arith.addf %117, %118 : vector<8x128xf32>
    %120 = math.tanh %119 : vector<8x128xf32>
    %121 = vector.broadcast %115 : f32 to vector<8x128xf32>
    %122 = arith.mulf %121, %120 : vector<8x128xf32>
    %123 = arith.addf %112, %122 : vector<8x128xf32>
    %c11 = arith.constant 11 : index
    %124 = memref.load %arg1[%c11] : memref<97xf32, #tpu.memory_space<smem>>
    %c43 = arith.constant 43 : index
    %125 = memref.load %arg1[%c43] : memref<97xf32, #tpu.memory_space<smem>>
    %c75 = arith.constant 75 : index
    %126 = memref.load %arg1[%c75] : memref<97xf32, #tpu.memory_space<smem>>
    %127 = vector.broadcast %124 : f32 to vector<8x128xf32>
    %128 = arith.mulf %0, %127 : vector<8x128xf32>
    %129 = vector.broadcast %125 : f32 to vector<8x128xf32>
    %130 = arith.addf %128, %129 : vector<8x128xf32>
    %131 = math.tanh %130 : vector<8x128xf32>
    %132 = vector.broadcast %126 : f32 to vector<8x128xf32>
    %133 = arith.mulf %132, %131 : vector<8x128xf32>
    %134 = arith.addf %123, %133 : vector<8x128xf32>
    %c12 = arith.constant 12 : index
    %135 = memref.load %arg1[%c12] : memref<97xf32, #tpu.memory_space<smem>>
    %c44 = arith.constant 44 : index
    %136 = memref.load %arg1[%c44] : memref<97xf32, #tpu.memory_space<smem>>
    %c76 = arith.constant 76 : index
    %137 = memref.load %arg1[%c76] : memref<97xf32, #tpu.memory_space<smem>>
    %138 = vector.broadcast %135 : f32 to vector<8x128xf32>
    %139 = arith.mulf %0, %138 : vector<8x128xf32>
    %140 = vector.broadcast %136 : f32 to vector<8x128xf32>
    %141 = arith.addf %139, %140 : vector<8x128xf32>
    %142 = math.tanh %141 : vector<8x128xf32>
    %143 = vector.broadcast %137 : f32 to vector<8x128xf32>
    %144 = arith.mulf %143, %142 : vector<8x128xf32>
    %145 = arith.addf %134, %144 : vector<8x128xf32>
    %c13 = arith.constant 13 : index
    %146 = memref.load %arg1[%c13] : memref<97xf32, #tpu.memory_space<smem>>
    %c45 = arith.constant 45 : index
    %147 = memref.load %arg1[%c45] : memref<97xf32, #tpu.memory_space<smem>>
    %c77 = arith.constant 77 : index
    %148 = memref.load %arg1[%c77] : memref<97xf32, #tpu.memory_space<smem>>
    %149 = vector.broadcast %146 : f32 to vector<8x128xf32>
    %150 = arith.mulf %0, %149 : vector<8x128xf32>
    %151 = vector.broadcast %147 : f32 to vector<8x128xf32>
    %152 = arith.addf %150, %151 : vector<8x128xf32>
    %153 = math.tanh %152 : vector<8x128xf32>
    %154 = vector.broadcast %148 : f32 to vector<8x128xf32>
    %155 = arith.mulf %154, %153 : vector<8x128xf32>
    %156 = arith.addf %145, %155 : vector<8x128xf32>
    %c14 = arith.constant 14 : index
    %157 = memref.load %arg1[%c14] : memref<97xf32, #tpu.memory_space<smem>>
    %c46 = arith.constant 46 : index
    %158 = memref.load %arg1[%c46] : memref<97xf32, #tpu.memory_space<smem>>
    %c78 = arith.constant 78 : index
    %159 = memref.load %arg1[%c78] : memref<97xf32, #tpu.memory_space<smem>>
    %160 = vector.broadcast %157 : f32 to vector<8x128xf32>
    %161 = arith.mulf %0, %160 : vector<8x128xf32>
    %162 = vector.broadcast %158 : f32 to vector<8x128xf32>
    %163 = arith.addf %161, %162 : vector<8x128xf32>
    %164 = math.tanh %163 : vector<8x128xf32>
    %165 = vector.broadcast %159 : f32 to vector<8x128xf32>
    %166 = arith.mulf %165, %164 : vector<8x128xf32>
    %167 = arith.addf %156, %166 : vector<8x128xf32>
    %c15 = arith.constant 15 : index
    %168 = memref.load %arg1[%c15] : memref<97xf32, #tpu.memory_space<smem>>
    %c47 = arith.constant 47 : index
    %169 = memref.load %arg1[%c47] : memref<97xf32, #tpu.memory_space<smem>>
    %c79 = arith.constant 79 : index
    %170 = memref.load %arg1[%c79] : memref<97xf32, #tpu.memory_space<smem>>
    %171 = vector.broadcast %168 : f32 to vector<8x128xf32>
    %172 = arith.mulf %0, %171 : vector<8x128xf32>
    %173 = vector.broadcast %169 : f32 to vector<8x128xf32>
    %174 = arith.addf %172, %173 : vector<8x128xf32>
    %175 = math.tanh %174 : vector<8x128xf32>
    %176 = vector.broadcast %170 : f32 to vector<8x128xf32>
    %177 = arith.mulf %176, %175 : vector<8x128xf32>
    %178 = arith.addf %167, %177 : vector<8x128xf32>
    %c16 = arith.constant 16 : index
    %179 = memref.load %arg1[%c16] : memref<97xf32, #tpu.memory_space<smem>>
    %c48 = arith.constant 48 : index
    %180 = memref.load %arg1[%c48] : memref<97xf32, #tpu.memory_space<smem>>
    %c80 = arith.constant 80 : index
    %181 = memref.load %arg1[%c80] : memref<97xf32, #tpu.memory_space<smem>>
    %182 = vector.broadcast %179 : f32 to vector<8x128xf32>
    %183 = arith.mulf %0, %182 : vector<8x128xf32>
    %184 = vector.broadcast %180 : f32 to vector<8x128xf32>
    %185 = arith.addf %183, %184 : vector<8x128xf32>
    %186 = math.tanh %185 : vector<8x128xf32>
    %187 = vector.broadcast %181 : f32 to vector<8x128xf32>
    %188 = arith.mulf %187, %186 : vector<8x128xf32>
    %189 = arith.addf %178, %188 : vector<8x128xf32>
    %c17 = arith.constant 17 : index
    %190 = memref.load %arg1[%c17] : memref<97xf32, #tpu.memory_space<smem>>
    %c49 = arith.constant 49 : index
    %191 = memref.load %arg1[%c49] : memref<97xf32, #tpu.memory_space<smem>>
    %c81 = arith.constant 81 : index
    %192 = memref.load %arg1[%c81] : memref<97xf32, #tpu.memory_space<smem>>
    %193 = vector.broadcast %190 : f32 to vector<8x128xf32>
    %194 = arith.mulf %0, %193 : vector<8x128xf32>
    %195 = vector.broadcast %191 : f32 to vector<8x128xf32>
    %196 = arith.addf %194, %195 : vector<8x128xf32>
    %197 = math.tanh %196 : vector<8x128xf32>
    %198 = vector.broadcast %192 : f32 to vector<8x128xf32>
    %199 = arith.mulf %198, %197 : vector<8x128xf32>
    %200 = arith.addf %189, %199 : vector<8x128xf32>
    %c18 = arith.constant 18 : index
    %201 = memref.load %arg1[%c18] : memref<97xf32, #tpu.memory_space<smem>>
    %c50 = arith.constant 50 : index
    %202 = memref.load %arg1[%c50] : memref<97xf32, #tpu.memory_space<smem>>
    %c82 = arith.constant 82 : index
    %203 = memref.load %arg1[%c82] : memref<97xf32, #tpu.memory_space<smem>>
    %204 = vector.broadcast %201 : f32 to vector<8x128xf32>
    %205 = arith.mulf %0, %204 : vector<8x128xf32>
    %206 = vector.broadcast %202 : f32 to vector<8x128xf32>
    %207 = arith.addf %205, %206 : vector<8x128xf32>
    %208 = math.tanh %207 : vector<8x128xf32>
    %209 = vector.broadcast %203 : f32 to vector<8x128xf32>
    %210 = arith.mulf %209, %208 : vector<8x128xf32>
    %211 = arith.addf %200, %210 : vector<8x128xf32>
    %c19 = arith.constant 19 : index
    %212 = memref.load %arg1[%c19] : memref<97xf32, #tpu.memory_space<smem>>
    %c51 = arith.constant 51 : index
    %213 = memref.load %arg1[%c51] : memref<97xf32, #tpu.memory_space<smem>>
    %c83 = arith.constant 83 : index
    %214 = memref.load %arg1[%c83] : memref<97xf32, #tpu.memory_space<smem>>
    %215 = vector.broadcast %212 : f32 to vector<8x128xf32>
    %216 = arith.mulf %0, %215 : vector<8x128xf32>
    %217 = vector.broadcast %213 : f32 to vector<8x128xf32>
    %218 = arith.addf %216, %217 : vector<8x128xf32>
    %219 = math.tanh %218 : vector<8x128xf32>
    %220 = vector.broadcast %214 : f32 to vector<8x128xf32>
    %221 = arith.mulf %220, %219 : vector<8x128xf32>
    %222 = arith.addf %211, %221 : vector<8x128xf32>
    %c20 = arith.constant 20 : index
    %223 = memref.load %arg1[%c20] : memref<97xf32, #tpu.memory_space<smem>>
    %c52 = arith.constant 52 : index
    %224 = memref.load %arg1[%c52] : memref<97xf32, #tpu.memory_space<smem>>
    %c84 = arith.constant 84 : index
    %225 = memref.load %arg1[%c84] : memref<97xf32, #tpu.memory_space<smem>>
    %226 = vector.broadcast %223 : f32 to vector<8x128xf32>
    %227 = arith.mulf %0, %226 : vector<8x128xf32>
    %228 = vector.broadcast %224 : f32 to vector<8x128xf32>
    %229 = arith.addf %227, %228 : vector<8x128xf32>
    %230 = math.tanh %229 : vector<8x128xf32>
    %231 = vector.broadcast %225 : f32 to vector<8x128xf32>
    %232 = arith.mulf %231, %230 : vector<8x128xf32>
    %233 = arith.addf %222, %232 : vector<8x128xf32>
    %c21 = arith.constant 21 : index
    %234 = memref.load %arg1[%c21] : memref<97xf32, #tpu.memory_space<smem>>
    %c53 = arith.constant 53 : index
    %235 = memref.load %arg1[%c53] : memref<97xf32, #tpu.memory_space<smem>>
    %c85 = arith.constant 85 : index
    %236 = memref.load %arg1[%c85] : memref<97xf32, #tpu.memory_space<smem>>
    %237 = vector.broadcast %234 : f32 to vector<8x128xf32>
    %238 = arith.mulf %0, %237 : vector<8x128xf32>
    %239 = vector.broadcast %235 : f32 to vector<8x128xf32>
    %240 = arith.addf %238, %239 : vector<8x128xf32>
    %241 = math.tanh %240 : vector<8x128xf32>
    %242 = vector.broadcast %236 : f32 to vector<8x128xf32>
    %243 = arith.mulf %242, %241 : vector<8x128xf32>
    %244 = arith.addf %233, %243 : vector<8x128xf32>
    %c22 = arith.constant 22 : index
    %245 = memref.load %arg1[%c22] : memref<97xf32, #tpu.memory_space<smem>>
    %c54 = arith.constant 54 : index
    %246 = memref.load %arg1[%c54] : memref<97xf32, #tpu.memory_space<smem>>
    %c86 = arith.constant 86 : index
    %247 = memref.load %arg1[%c86] : memref<97xf32, #tpu.memory_space<smem>>
    %248 = vector.broadcast %245 : f32 to vector<8x128xf32>
    %249 = arith.mulf %0, %248 : vector<8x128xf32>
    %250 = vector.broadcast %246 : f32 to vector<8x128xf32>
    %251 = arith.addf %249, %250 : vector<8x128xf32>
    %252 = math.tanh %251 : vector<8x128xf32>
    %253 = vector.broadcast %247 : f32 to vector<8x128xf32>
    %254 = arith.mulf %253, %252 : vector<8x128xf32>
    %255 = arith.addf %244, %254 : vector<8x128xf32>
    %c23 = arith.constant 23 : index
    %256 = memref.load %arg1[%c23] : memref<97xf32, #tpu.memory_space<smem>>
    %c55 = arith.constant 55 : index
    %257 = memref.load %arg1[%c55] : memref<97xf32, #tpu.memory_space<smem>>
    %c87 = arith.constant 87 : index
    %258 = memref.load %arg1[%c87] : memref<97xf32, #tpu.memory_space<smem>>
    %259 = vector.broadcast %256 : f32 to vector<8x128xf32>
    %260 = arith.mulf %0, %259 : vector<8x128xf32>
    %261 = vector.broadcast %257 : f32 to vector<8x128xf32>
    %262 = arith.addf %260, %261 : vector<8x128xf32>
    %263 = math.tanh %262 : vector<8x128xf32>
    %264 = vector.broadcast %258 : f32 to vector<8x128xf32>
    %265 = arith.mulf %264, %263 : vector<8x128xf32>
    %266 = arith.addf %255, %265 : vector<8x128xf32>
    %c24 = arith.constant 24 : index
    %267 = memref.load %arg1[%c24] : memref<97xf32, #tpu.memory_space<smem>>
    %c56 = arith.constant 56 : index
    %268 = memref.load %arg1[%c56] : memref<97xf32, #tpu.memory_space<smem>>
    %c88 = arith.constant 88 : index
    %269 = memref.load %arg1[%c88] : memref<97xf32, #tpu.memory_space<smem>>
    %270 = vector.broadcast %267 : f32 to vector<8x128xf32>
    %271 = arith.mulf %0, %270 : vector<8x128xf32>
    %272 = vector.broadcast %268 : f32 to vector<8x128xf32>
    %273 = arith.addf %271, %272 : vector<8x128xf32>
    %274 = math.tanh %273 : vector<8x128xf32>
    %275 = vector.broadcast %269 : f32 to vector<8x128xf32>
    %276 = arith.mulf %275, %274 : vector<8x128xf32>
    %277 = arith.addf %266, %276 : vector<8x128xf32>
    %c25 = arith.constant 25 : index
    %278 = memref.load %arg1[%c25] : memref<97xf32, #tpu.memory_space<smem>>
    %c57 = arith.constant 57 : index
    %279 = memref.load %arg1[%c57] : memref<97xf32, #tpu.memory_space<smem>>
    %c89 = arith.constant 89 : index
    %280 = memref.load %arg1[%c89] : memref<97xf32, #tpu.memory_space<smem>>
    %281 = vector.broadcast %278 : f32 to vector<8x128xf32>
    %282 = arith.mulf %0, %281 : vector<8x128xf32>
    %283 = vector.broadcast %279 : f32 to vector<8x128xf32>
    %284 = arith.addf %282, %283 : vector<8x128xf32>
    %285 = math.tanh %284 : vector<8x128xf32>
    %286 = vector.broadcast %280 : f32 to vector<8x128xf32>
    %287 = arith.mulf %286, %285 : vector<8x128xf32>
    %288 = arith.addf %277, %287 : vector<8x128xf32>
    %c26 = arith.constant 26 : index
    %289 = memref.load %arg1[%c26] : memref<97xf32, #tpu.memory_space<smem>>
    %c58 = arith.constant 58 : index
    %290 = memref.load %arg1[%c58] : memref<97xf32, #tpu.memory_space<smem>>
    %c90 = arith.constant 90 : index
    %291 = memref.load %arg1[%c90] : memref<97xf32, #tpu.memory_space<smem>>
    %292 = vector.broadcast %289 : f32 to vector<8x128xf32>
    %293 = arith.mulf %0, %292 : vector<8x128xf32>
    %294 = vector.broadcast %290 : f32 to vector<8x128xf32>
    %295 = arith.addf %293, %294 : vector<8x128xf32>
    %296 = math.tanh %295 : vector<8x128xf32>
    %297 = vector.broadcast %291 : f32 to vector<8x128xf32>
    %298 = arith.mulf %297, %296 : vector<8x128xf32>
    %299 = arith.addf %288, %298 : vector<8x128xf32>
    %c27 = arith.constant 27 : index
    %300 = memref.load %arg1[%c27] : memref<97xf32, #tpu.memory_space<smem>>
    %c59 = arith.constant 59 : index
    %301 = memref.load %arg1[%c59] : memref<97xf32, #tpu.memory_space<smem>>
    %c91 = arith.constant 91 : index
    %302 = memref.load %arg1[%c91] : memref<97xf32, #tpu.memory_space<smem>>
    %303 = vector.broadcast %300 : f32 to vector<8x128xf32>
    %304 = arith.mulf %0, %303 : vector<8x128xf32>
    %305 = vector.broadcast %301 : f32 to vector<8x128xf32>
    %306 = arith.addf %304, %305 : vector<8x128xf32>
    %307 = math.tanh %306 : vector<8x128xf32>
    %308 = vector.broadcast %302 : f32 to vector<8x128xf32>
    %309 = arith.mulf %308, %307 : vector<8x128xf32>
    %310 = arith.addf %299, %309 : vector<8x128xf32>
    %c28 = arith.constant 28 : index
    %311 = memref.load %arg1[%c28] : memref<97xf32, #tpu.memory_space<smem>>
    %c60 = arith.constant 60 : index
    %312 = memref.load %arg1[%c60] : memref<97xf32, #tpu.memory_space<smem>>
    %c92 = arith.constant 92 : index
    %313 = memref.load %arg1[%c92] : memref<97xf32, #tpu.memory_space<smem>>
    %314 = vector.broadcast %311 : f32 to vector<8x128xf32>
    %315 = arith.mulf %0, %314 : vector<8x128xf32>
    %316 = vector.broadcast %312 : f32 to vector<8x128xf32>
    %317 = arith.addf %315, %316 : vector<8x128xf32>
    %318 = math.tanh %317 : vector<8x128xf32>
    %319 = vector.broadcast %313 : f32 to vector<8x128xf32>
    %320 = arith.mulf %319, %318 : vector<8x128xf32>
    %321 = arith.addf %310, %320 : vector<8x128xf32>
    %c29 = arith.constant 29 : index
    %322 = memref.load %arg1[%c29] : memref<97xf32, #tpu.memory_space<smem>>
    %c61 = arith.constant 61 : index
    %323 = memref.load %arg1[%c61] : memref<97xf32, #tpu.memory_space<smem>>
    %c93 = arith.constant 93 : index
    %324 = memref.load %arg1[%c93] : memref<97xf32, #tpu.memory_space<smem>>
    %325 = vector.broadcast %322 : f32 to vector<8x128xf32>
    %326 = arith.mulf %0, %325 : vector<8x128xf32>
    %327 = vector.broadcast %323 : f32 to vector<8x128xf32>
    %328 = arith.addf %326, %327 : vector<8x128xf32>
    %329 = math.tanh %328 : vector<8x128xf32>
    %330 = vector.broadcast %324 : f32 to vector<8x128xf32>
    %331 = arith.mulf %330, %329 : vector<8x128xf32>
    %332 = arith.addf %321, %331 : vector<8x128xf32>
    %c30 = arith.constant 30 : index
    %333 = memref.load %arg1[%c30] : memref<97xf32, #tpu.memory_space<smem>>
    %c62 = arith.constant 62 : index
    %334 = memref.load %arg1[%c62] : memref<97xf32, #tpu.memory_space<smem>>
    %c94 = arith.constant 94 : index
    %335 = memref.load %arg1[%c94] : memref<97xf32, #tpu.memory_space<smem>>
    %336 = vector.broadcast %333 : f32 to vector<8x128xf32>
    %337 = arith.mulf %0, %336 : vector<8x128xf32>
    %338 = vector.broadcast %334 : f32 to vector<8x128xf32>
    %339 = arith.addf %337, %338 : vector<8x128xf32>
    %340 = math.tanh %339 : vector<8x128xf32>
    %341 = vector.broadcast %335 : f32 to vector<8x128xf32>
    %342 = arith.mulf %341, %340 : vector<8x128xf32>
    %343 = arith.addf %332, %342 : vector<8x128xf32>
    %c31 = arith.constant 31 : index
    %344 = memref.load %arg1[%c31] : memref<97xf32, #tpu.memory_space<smem>>
    %c63 = arith.constant 63 : index
    %345 = memref.load %arg1[%c63] : memref<97xf32, #tpu.memory_space<smem>>
    %c95 = arith.constant 95 : index
    %346 = memref.load %arg1[%c95] : memref<97xf32, #tpu.memory_space<smem>>
    %347 = vector.broadcast %344 : f32 to vector<8x128xf32>
    %348 = arith.mulf %0, %347 : vector<8x128xf32>
    %349 = vector.broadcast %345 : f32 to vector<8x128xf32>
    %350 = arith.addf %348, %349 : vector<8x128xf32>
    %351 = math.tanh %350 : vector<8x128xf32>
    %352 = vector.broadcast %346 : f32 to vector<8x128xf32>
    %353 = arith.mulf %352, %351 : vector<8x128xf32>
    %354 = arith.addf %343, %353 : vector<8x128xf32>
    %c0_2 = arith.constant 0 : index
    %c0_3 = arith.constant 0 : index
    %355 = vector.load %arg3[%c0_2, %c0_3] : memref<8x128xf32, #tpu.memory_space<vmem>>, vector<8x128xf32>
    tpu.vector_store %arg3[%c0_2, %c0_3], %354 {strides = array<i32>} : memref<8x128xf32, #tpu.memory_space<vmem>>, vector<8x128xf32>,
    return
  }
  func.func @transform_0(%arg0: i32) -> i32 {
    %c0_i32 = arith.constant 0 : i32
    %c0_i32_0 = arith.constant 0 : i32
    return %c0_i32 : i32
  }
  func.func @transform_1(%arg0: i32) -> (i32, i32) {
    %c0_i32 = arith.constant 0 : i32
    %c0_i32_0 = arith.constant 0 : i32
    return %arg0, %c0_i32 : i32, i32
  }
  func.func @transform_2(%arg0: i32) -> (i32, i32) {
    %c0_i32 = arith.constant 0 : i32
    %c0_i32_0 = arith.constant 0 : i32
    return %arg0, %c0_i32 : i32, i32
  }
}

</mosaic_0001>

<llo_original>
// kernel: tpu_custom_call.1
$region0: #{tpu_custom_call.1}
  #allocation0 [shape = 'u32[]', space=smem, size = 0x4, offset = 0x4, fixed_abs, tag = 'smem constant byte address 0x4 - core index']
  #allocation1 [shape = 'u32[144,128]{1,0:T(1,128)}', space=vmem, size = 0x12000, scoped, tag = 'internal scratch']
  %s0 = inlined_call_operand.hbm [shape: f32[97], index: 0, kind: input, shape index: {}]
  %s1 = inlined_call_operand.hbm [shape: f32[8,128], index: 1, kind: input, shape index: {}]
  %s2 = inlined_call_operand.hbm [shape: f32[8,128], index: 2, kind: output, shape index: {}]
  %s3 = sld [smem:[#allocation0]]
  $region26: #{tpu_custom_call.1} parent=0
    _
  %s5 = ssub.s32 1, %s3
  %s6 = scalar_select 0, %s5, %s3
  $region1: #{tpu_custom_call.1} parent=0
    #allocation2 [shape = 'u8[512]{0}', space=smem, size = 0x200, scoped, tag = 'input window, operand 0, single buffered']
    #allocation3 [shape = 's32[1]{0}', space=sflag, size = 0x4, scoped, tag = 'scoped memory for tpu_custom_call.1']
    #allocation4 [shape = 's32[1]{0}', space=sflag, size = 0x4, scoped, tag = 'scoped memory for tpu_custom_call.1']
    #allocation5 [shape = 's32[1]{0}', space=sflag, size = 0x4, scoped, tag = 'scoped memory for tpu_custom_call.1']
    #allocation6 [shape = 'u8[4096]{0}', space=vmem, size = 0x1000, scoped, tag = 'input window, operand 1, single buffered']
    #allocation7 [shape = 'u8[4096]{0}', space=vmem, size = 0x1000, scoped, tag = 'output window, operand 0, single buffered']
    %7 = vsyncpa [#allocation5], 0
    %8 = vsyncpa [#allocation3], 0
    %9 = vsyncpa [#allocation4], 0
    // Predicated region
    $region2: #{tpu_custom_call.1} parent=1 // pred_check
      _
    $region3: #{tpu_custom_call.1} parent=1 // pred_check_branch
      %11 = sbr.rel (0) target = $region5
    $region4: #{tpu_custom_call.1} parent=1 // pred_region
      %s13 = ssub.s32 16, 16
      %14 = vsyncadd [#allocation5], %s13
      %17 = dma.hbm_to_smem %s0, 16, [#allocation2], [#allocation5]
    $region5: #{tpu_custom_call.1} parent=1 // pred_fallthru
      _
    // Predicated region
    $region6: #{tpu_custom_call.1} parent=1 // pred_check
      _
    $region7: #{tpu_custom_call.1} parent=1 // pred_check_branch
      %19 = sbr.rel (0) target = $region9
    $region8: #{tpu_custom_call.1} parent=1 // pred_region
      %s21 = ssub.s32 128, 128
      %22 = vsyncadd [#allocation3], %s21
      %s24 = sshll.u32 [#allocation6], 4
      %s25 = int_to_ptr.vmem [resolvable:$true] %s24
      %27 = dma.hbm_to_vmem [thread:$0]  %s1, 128, %s25, [#allocation3]
    $region9: #{tpu_custom_call.1} parent=1 // pred_fallthru
      _
    // Predicated region
    $region10: #{tpu_custom_call.1} parent=1 // pred_check
      _
    $region11: #{tpu_custom_call.1} parent=1 // pred_check_branch
      %29 = sbr.rel (0) target = $region13
    $region12: #{tpu_custom_call.1} parent=1 // pred_region
      %30 = dma.done [#allocation5], 16
    $region13: #{tpu_custom_call.1} parent=1 // pred_fallthru
      _
    // Predicated region
    $region14: #{tpu_custom_call.1} parent=1 // pred_check
      _
    $region15: #{tpu_custom_call.1} parent=1 // pred_check_branch
      %32 = sbr.rel (0) target = $region17
    $region16: #{tpu_custom_call.1} parent=1 // pred_region
      %33 = dma.done [#allocation3], 128
    $region17: #{tpu_custom_call.1} parent=1 // pred_fallthru
      _
    %34 = sfence
    %v35 = vld [vmem:[#allocation6] sm:$0xff]
    %s36 = sld [smem:[#allocation2 + $0x60]]
    %v37 = vstv %s36
    %s38 = sld [smem:[#allocation2]]
    %s39 = sld [smem:[#allocation2 + $0x20]]
    %s40 = sld [smem:[#allocation2 + $0x40]]
    %v41 = vstv %s38
    %v42 = vmul.f32 %v35, %v41
    %v43 = vstv %s39
    %v44 = vadd.f32 %v42, %v43
    %v45 = vtanh.pop %v44
    %v46 = vstv %s40
    %v47 = vmul.f32 %v46, %v45
    %v48 = vadd.f32 %v37, %v47
    %s49 = sld [smem:[#allocation2 + $0x1]]
    %s50 = sld [smem:[#allocation2 + $0x21]]
    %s51 = sld [smem:[#allocation2 + $0x41]]
    %v52 = vstv %s49
    %v53 = vmul.f32 %v35, %v52
    %v54 = vstv %s50
    %v55 = vadd.f32 %v53, %v54
    %v56 = vtanh.pop %v55
    %v57 = vstv %s51
    %v58 = vmul.f32 %v57, %v56
    %v59 = vadd.f32 %v48, %v58
    %s60 = sld [smem:[#allocation2 + $0x2]]
    %s61 = sld [smem:[#allocation2 + $0x22]]
    %s62 = sld [smem:[#allocation2 + $0x42]]
    %v63 = vstv %s60
    %v64 = vmul.f32 %v35, %v63
    %v65 = vstv %s61
    %v66 = vadd.f32 %v64, %v65
    %v67 = vtanh.pop %v66
    %v68 = vstv %s62
    %v69 = vmul.f32 %v68, %v67
    %v70 = vadd.f32 %v59, %v69
    %s71 = sld [smem:[#allocation2 + $0x3]]
    %s72 = sld [smem:[#allocation2 + $0x23]]
    %s73 = sld [smem:[#allocation2 + $0x43]]
    %v74 = vstv %s71
    %v75 = vmul.f32 %v35, %v74
    %v76 = vstv %s72
    %v77 = vadd.f32 %v75, %v76
    %v78 = vtanh.pop %v77
    %v79 = vstv %s73
    %v80 = vmul.f32 %v79, %v78
    %v81 = vadd.f32 %v70, %v80
    %s82 = sld [smem:[#allocation2 + $0x4]]
    %s83 = sld [smem:[#allocation2 + $0x24]]
    %s84 = sld [smem:[#allocation2 + $0x44]]
    %v85 = vstv %s82
    %v86 = vmul.f32 %v35, %v85
    %v87 = vstv %s83
    %v88 = vadd.f32 %v86, %v87
    %v89 = vtanh.pop %v88
    %v90 = vstv %s84
    %v91 = vmul.f32 %v90, %v89
    %v92 = vadd.f32 %v81, %v91
    %s93 = sld [smem:[#allocation2 + $0x5]]
    %s94 = sld [smem:[#allocation2 + $0x25]]
    %s95 = sld [smem:[#allocation2 + $0x45]]
    %v96 = vstv %s93
    %v97 = vmul.f32 %v35, %v96
    %v98 = vstv %s94
    %v99 = vadd.f32 %v97, %v98
    %v100 = vtanh.pop %v99
    %v101 = vstv %s95
    %v102 = vmul.f32 %v101, %v100
    %v103 = vadd.f32 %v92, %v102
    %s104 = sld [smem:[#allocation2 + $0x6]]
    %s105 = sld [smem:[#allocation2 + $0x26]]
    %s106 = sld [smem:[#allocation2 + $0x46]]
    %v107 = vstv %s104
    %v108 = vmul.f32 %v35, %v107
    %v109 = vstv %s105
    %v110 = vadd.f32 %v108, %v109
    %v111 = vtanh.pop %v110
    %v112 = vstv %s106
    %v113 = vmul.f32 %v112, %v111
    %v114 = vadd.f32 %v103, %v113
    %s115 = sld [smem:[#allocation2 + $0x7]]
    %s116 = sld [smem:[#allocation2 + $0x27]]
    %s117 = sld [smem:[#allocation2 + $0x47]]
    %v118 = vstv %s115
    %v119 = vmul.f32 %v35, %v118
    %v120 = vstv %s116
    %v121 = vadd.f32 %v119, %v120
    %v122 = vtanh.pop %v121
    %v123 = vstv %s117
    %v124 = vmul.f32 %v123, %v122
    %v125 = vadd.f32 %v114, %v124
    %s126 = sld [smem:[#allocation2 + $0x8]]
    %s127 = sld [smem:[#allocation2 + $0x28]]
    %s128 = sld [smem:[#allocation2 + $0x48]]
    %v129 = vstv %s126
    %v130 = vmul.f32 %v35, %v129
    %v131 = vstv %s127
    %v132 = vadd.f32 %v130, %v131
    %v133 = vtanh.pop %v132
    %v134 = vstv %s128
    %v135 = vmul.f32 %v134, %v133
    %v136 = vadd.f32 %v125, %v135
    %s137 = sld [smem:[#allocation2 + $0x9]]
    %s138 = sld [smem:[#allocation2 + $0x29]]
    %s139 = sld [smem:[#allocation2 + $0x49]]
    %v140 = vstv %s137
    %v141 = vmul.f32 %v35, %v140
    %v142 = vstv %s138
    %v143 = vadd.f32 %v141, %v142
    %v144 = vtanh.pop %v143
    %v145 = vstv %s139
    %v146 = vmul.f32 %v145, %v144
    %v147 = vadd.f32 %v136, %v146
    %s148 = sld [smem:[#allocation2 + $0xa]]
    %s149 = sld [smem:[#allocation2 + $0x2a]]
    %s150 = sld [smem:[#allocation2 + $0x4a]]
    %v151 = vstv %s148
    %v152 = vmul.f32 %v35, %v151
    %v153 = vstv %s149
    %v154 = vadd.f32 %v152, %v153
    %v155 = vtanh.pop %v154
    %v156 = vstv %s150
    %v157 = vmul.f32 %v156, %v155
    %v158 = vadd.f32 %v147, %v157
    %s159 = sld [smem:[#allocation2 + $0xb]]
    %s160 = sld [smem:[#allocation2 + $0x2b]]
    %s161 = sld [smem:[#allocation2 + $0x4b]]
    %v162 = vstv %s159
    %v163 = vmul.f32 %v35, %v162
    %v164 = vstv %s160
    %v165 = vadd.f32 %v163, %v164
    %v166 = vtanh.pop %v165
    %v167 = vstv %s161
    %v168 = vmul.f32 %v167, %v166
    %v169 = vadd.f32 %v158, %v168
    %s170 = sld [smem:[#allocation2 + $0xc]]
    %s171 = sld [smem:[#allocation2 + $0x2c]]
    %s172 = sld [smem:[#allocation2 + $0x4c]]
    %v173 = vstv %s170
    %v174 = vmul.f32 %v35, %v173
    %v175 = vstv %s171
    %v176 = vadd.f32 %v174, %v175
    %v177 = vtanh.pop %v176
    %v178 = vstv %s172
    %v179 = vmul.f32 %v178, %v177
    %v180 = vadd.f32 %v169, %v179
    %s181 = sld [smem:[#allocation2 + $0xd]]
    %s182 = sld [smem:[#allocation2 + $0x2d]]
    %s183 = sld [smem:[#allocation2 + $0x4d]]
    %v184 = vstv %s181
    %v185 = vmul.f32 %v35, %v184
    %v186 = vstv %s182
    %v187 = vadd.f32 %v185, %v186
    %v188 = vtanh.pop %v187
    %v189 = vstv %s183
    %v190 = vmul.f32 %v189, %v188
    %v191 = vadd.f32 %v180, %v190
    %s192 = sld [smem:[#allocation2 + $0xe]]
    %s193 = sld [smem:[#allocation2 + $0x2e]]
    %s194 = sld [smem:[#allocation2 + $0x4e]]
    %v195 = vstv %s192
    %v196 = vmul.f32 %v35, %v195
    %v197 = vstv %s193
    %v198 = vadd.f32 %v196, %v197
    %v199 = vtanh.pop %v198
    %v200 = vstv %s194
    %v201 = vmul.f32 %v200, %v199
    %v202 = vadd.f32 %v191, %v201
    %s203 = sld [smem:[#allocation2 + $0xf]]
    %s204 = sld [smem:[#allocation2 + $0x2f]]
    %s205 = sld [smem:[#allocation2 + $0x4f]]
    %v206 = vstv %s203
    %v207 = vmul.f32 %v35, %v206
    %v208 = vstv %s204
    %v209 = vadd.f32 %v207, %v208
    %v210 = vtanh.pop %v209
    %v211 = vstv %s205
    %v212 = vmul.f32 %v211, %v210
    %v213 = vadd.f32 %v202, %v212
    %s214 = sld [smem:[#allocation2 + $0x10]]
    %s215 = sld [smem:[#allocation2 + $0x30]]
    %s216 = sld [smem:[#allocation2 + $0x50]]
    %v217 = vstv %s214
    %v218 = vmul.f32 %v35, %v217
    %v219 = vstv %s215
    %v220 = vadd.f32 %v218, %v219
    %v221 = vtanh.pop %v220
    %v222 = vstv %s216
    %v223 = vmul.f32 %v222, %v221
    %v224 = vadd.f32 %v213, %v223
    %s225 = sld [smem:[#allocation2 + $0x11]]
    %s226 = sld [smem:[#allocation2 + $0x31]]
    %s227 = sld [smem:[#allocation2 + $0x51]]
    %v228 = vstv %s225
    %v229 = vmul.f32 %v35, %v228
    %v230 = vstv %s226
    %v231 = vadd.f32 %v229, %v230
    %v232 = vtanh.pop %v231
    %v233 = vstv %s227
    %v234 = vmul.f32 %v233, %v232
    %v235 = vadd.f32 %v224, %v234
    %s236 = sld [smem:[#allocation2 + $0x12]]
    %s237 = sld [smem:[#allocation2 + $0x32]]
    %s238 = sld [smem:[#allocation2 + $0x52]]
    %v239 = vstv %s236
    %v240 = vmul.f32 %v35, %v239
    %v241 = vstv %s237
    %v242 = vadd.f32 %v240, %v241
    %v243 = vtanh.pop %v242
    %v244 = vstv %s238
    %v245 = vmul.f32 %v244, %v243
    %v246 = vadd.f32 %v235, %v245
    %s247 = sld [smem:[#allocation2 + $0x13]]
    %s248 = sld [smem:[#allocation2 + $0x33]]
    %s249 = sld [smem:[#allocation2 + $0x53]]
    %v250 = vstv %s247
    %v251 = vmul.f32 %v35, %v250
    %v252 = vstv %s248
    %v253 = vadd.f32 %v251, %v252
    %v254 = vtanh.pop %v253
    %v255 = vstv %s249
    %v256 = vmul.f32 %v255, %v254
    %v257 = vadd.f32 %v246, %v256
    %s258 = sld [smem:[#allocation2 + $0x14]]
    %s259 = sld [smem:[#allocation2 + $0x34]]
    %s260 = sld [smem:[#allocation2 + $0x54]]
    %v261 = vstv %s258
    %v262 = vmul.f32 %v35, %v261
    %v263 = vstv %s259
    %v264 = vadd.f32 %v262, %v263
    %v265 = vtanh.pop %v264
    %v266 = vstv %s260
    %v267 = vmul.f32 %v266, %v265
    %v268 = vadd.f32 %v257, %v267
    %s269 = sld [smem:[#allocation2 + $0x15]]
    %s270 = sld [smem:[#allocation2 + $0x35]]
    %s271 = sld [smem:[#allocation2 + $0x55]]
    %v272 = vstv %s269
    %v273 = vmul.f32 %v35, %v272
    %v274 = vstv %s270
    %v275 = vadd.f32 %v273, %v274
    %v276 = vtanh.pop %v275
    %v277 = vstv %s271
    %v278 = vmul.f32 %v277, %v276
    %v279 = vadd.f32 %v268, %v278
    %s280 = sld [smem:[#allocation2 + $0x16]]
    %s281 = sld [smem:[#allocation2 + $0x36]]
    %s282 = sld [smem:[#allocation2 + $0x56]]
    %v283 = vstv %s280
    %v284 = vmul.f32 %v35, %v283
    %v285 = vstv %s281
    %v286 = vadd.f32 %v284, %v285
    %v287 = vtanh.pop %v286
    %v288 = vstv %s282
    %v289 = vmul.f32 %v288, %v287
    %v290 = vadd.f32 %v279, %v289
    %s291 = sld [smem:[#allocation2 + $0x17]]
    %s292 = sld [smem:[#allocation2 + $0x37]]
    %s293 = sld [smem:[#allocation2 + $0x57]]
    %v294 = vstv %s291
    %v295 = vmul.f32 %v35, %v294
    %v296 = vstv %s292
    %v297 = vadd.f32 %v295, %v296
    %v298 = vtanh.pop %v297
    %v299 = vstv %s293
    %v300 = vmul.f32 %v299, %v298
    %v301 = vadd.f32 %v290, %v300
    %s302 = sld [smem:[#allocation2 + $0x18]]
    %s303 = sld [smem:[#allocation2 + $0x38]]
    %s304 = sld [smem:[#allocation2 + $0x58]]
    %v305 = vstv %s302
    %v306 = vmul.f32 %v35, %v305
    %v307 = vstv %s303
    %v308 = vadd.f32 %v306, %v307
    %v309 = vtanh.pop %v308
    %v310 = vstv %s304
    %v311 = vmul.f32 %v310, %v309
    %v312 = vadd.f32 %v301, %v311
    %s313 = sld [smem:[#allocation2 + $0x19]]
    %s314 = sld [smem:[#allocation2 + $0x39]]
    %s315 = sld [smem:[#allocation2 + $0x59]]
    %v316 = vstv %s313
    %v317 = vmul.f32 %v35, %v316
    %v318 = vstv %s314
    %v319 = vadd.f32 %v317, %v318
    %v320 = vtanh.pop %v319
    %v321 = vstv %s315
    %v322 = vmul.f32 %v321, %v320
    %v323 = vadd.f32 %v312, %v322
    %s324 = sld [smem:[#allocation2 + $0x1a]]
    %s325 = sld [smem:[#allocation2 + $0x3a]]
    %s326 = sld [smem:[#allocation2 + $0x5a]]
    %v327 = vstv %s324
    %v328 = vmul.f32 %v35, %v327
    %v329 = vstv %s325
    %v330 = vadd.f32 %v328, %v329
    %v331 = vtanh.pop %v330
    %v332 = vstv %s326
    %v333 = vmul.f32 %v332, %v331
    %v334 = vadd.f32 %v323, %v333
    %s335 = sld [smem:[#allocation2 + $0x1b]]
    %s336 = sld [smem:[#allocation2 + $0x3b]]
    %s337 = sld [smem:[#allocation2 + $0x5b]]
    %v338 = vstv %s335
    %v339 = vmul.f32 %v35, %v338
    %v340 = vstv %s336
    %v341 = vadd.f32 %v339, %v340
    %v342 = vtanh.pop %v341
    %v343 = vstv %s337
    %v344 = vmul.f32 %v343, %v342
    %v345 = vadd.f32 %v334, %v344
    %s346 = sld [smem:[#allocation2 + $0x1c]]
    %s347 = sld [smem:[#allocation2 + $0x3c]]
    %s348 = sld [smem:[#allocation2 + $0x5c]]
    %v349 = vstv %s346
    %v350 = vmul.f32 %v35, %v349
    %v351 = vstv %s347
    %v352 = vadd.f32 %v350, %v351
    %v353 = vtanh.pop %v352
    %v354 = vstv %s348
    %v355 = vmul.f32 %v354, %v353
    %v356 = vadd.f32 %v345, %v355
    %s357 = sld [smem:[#allocation2 + $0x1d]]
    %s358 = sld [smem:[#allocation2 + $0x3d]]
    %s359 = sld [smem:[#allocation2 + $0x5d]]
    %v360 = vstv %s357
    %v361 = vmul.f32 %v35, %v360
    %v362 = vstv %s358
    %v363 = vadd.f32 %v361, %v362
    %v364 = vtanh.pop %v363
    %v365 = vstv %s359
    %v366 = vmul.f32 %v365, %v364
    %v367 = vadd.f32 %v356, %v366
    %s368 = sld [smem:[#allocation2 + $0x1e]]
    %s369 = sld [smem:[#allocation2 + $0x3e]]
    %s370 = sld [smem:[#allocation2 + $0x5e]]
    %v371 = vstv %s368
    %v372 = vmul.f32 %v35, %v371
    %v373 = vstv %s369
    %v374 = vadd.f32 %v372, %v373
    %v375 = vtanh.pop %v374
    %v376 = vstv %s370
    %v377 = vmul.f32 %v376, %v375
    %v378 = vadd.f32 %v367, %v377
    %s379 = sld [smem:[#allocation2 + $0x1f]]
    %s380 = sld [smem:[#allocation2 + $0x3f]]
    %s381 = sld [smem:[#allocation2 + $0x5f]]
    %v382 = vstv %s379
    %v383 = vmul.f32 %v35, %v382
    %v384 = vstv %s380
    %v385 = vadd.f32 %v383, %v384
    %v386 = vtanh.pop %v385
    %v387 = vstv %s381
    %v388 = vmul.f32 %v387, %v386
    %v389 = vadd.f32 %v378, %v388
    %390 = vst [vmem:[#allocation7] sm:$0xff] %v389
    // Predicated region
    $region18: #{tpu_custom_call.1} parent=1 // pred_check
      _
    $region19: #{tpu_custom_call.1} parent=1 // pred_check_branch
      %392 = sbr.rel (0) target = $region21
    $region20: #{tpu_custom_call.1} parent=1 // pred_region
      %s394 = ssub.s32 128, 128
      %395 = vsyncadd [#allocation4], %s394
      %s397 = sshll.u32 [#allocation7], 4
      %s398 = int_to_ptr.vmem [resolvable:$true] %s397
      %400 = dma.vmem_to_hbm [thread:$0]  %s398, 128, %s2, [#allocation4]
    $region21: #{tpu_custom_call.1} parent=1 // pred_fallthru
      _
    // Predicated region
    $region22: #{tpu_custom_call.1} parent=1 // pred_check
      _
    $region23: #{tpu_custom_call.1} parent=1 // pred_check_branch
      %402 = sbr.rel (0) target = $region25
    $region24: #{tpu_custom_call.1} parent=1 // pred_region
      %403 = dma.done [#allocation4], 128
    $region25: #{tpu_custom_call.1} parent=1 // pred_fallthru
      _
    %404 = vsyncpa [#allocation3], 1
    %405 = vsyncpa [#allocation4], 1
    %406 = vsyncpa [#allocation5], 1

</llo_original>
